<compile_context>
chip_gen: v7x
topology: tpu7x:2x2x1
jax: 0.10.0
libtpu: 0.0.40
codegen_flags: <defaults>
</compile_context>

<pallas_src>
import functools

import jax
import jax.numpy as jnp
from jax.experimental import pallas as pl
from jax.experimental.pallas import tpu as pltpu


def _decoder_kernel(mix_ref, mask_ref, w_ref, out_ref, *, k_valid, tk, ragged):
    # mix_ref / mask_ref : (1, N, TK) input blocks (bf16 or f32)
    # w_ref              : (N, L) basis-signal weights (resident across grid)
    # out_ref            : (1, 1, L, TK) lane-dense output block (frames on lanes)
    prod = mix_ref[0] * mask_ref[0]                               # [N, TK]
    if ragged:
        # Zero frame columns past the true K (only the last tile is ragged);
        # one VPU compare/select hidden under the input DMA, no HBM pad copy.
        t = pl.program_id(0)
        col = jax.lax.broadcasted_iota(jnp.int32, prod.shape, dimension=1)
        prod = jnp.where(t * tk + col < k_valid, prod, jnp.zeros_like(prod))
    # est_t[l, k] = sum_n W[n, l] * prod[n, k]  (transpose fused; f32 accumulate)
    est_t = jax.lax.dot_general(
        w_ref[...], prod,
        dimension_numbers=(((0,), (0,)), ((), ())),
        preferred_element_type=jnp.float32,
    )                                                             # [L, TK] f32
    out_ref[0, 0] = est_t.astype(out_ref.dtype)


def _vmem_budget_bytes():
    # Generation-aware cap (v5e/v6e: 128 MiB, v7x: 64 MiB per TC).
    try:
        cap = pltpu.get_tpu_info().vmem_capacity_bytes
    except Exception:
        cap = 64 * 2**20                    # conservative fallback
    return int(0.7 * cap)


def _pick_frame_tile(N, L, in_item, out_item, budget, tk_max):
    """Largest multiple-of-128 frame tile whose per-step working set fits."""
    best, tk = 128, 128
    while tk <= tk_max:
        per_tile = (
            2 * 2 * N * tk * in_item        # double-buffered mixture + mask blocks
            + 2 * L * tk * out_item         # double-buffered output block
            + N * tk * in_item              # prod temporary
            + L * tk * 4                    # f32 accumulator (est_t)
            + N * tk * 4                    # iota/select headroom (ragged path)
            + 2 * N * L * in_item           # resident weights (conservative x2)
        )
        if per_tile <= budget:
            best = tk
        tk *= 2
    return best


def decoder_forward(mixture_w, est_mask, weight_nl, *, tk_max=4096,
                    out_dtype=jnp.float32):
    """mixture_w, est_mask: [M, N, K] (bf16 preferred, f32 ok).
    weight_nl: [N, L] (= PyTorch nn.Linear(N, L, bias=False).weight.T).
    Returns [M, (K-1)*(L//2) + L] in `out_dtype`."""
    M, N, K = mixture_w.shape
    Nw, L = weight_nl.shape
    assert Nw == N
    assert est_mask.shape == mixture_w.shape
    assert L % 2 == 0, "kernel assumes even L (50% overlap-add)"
    hop = L // 2
    T = (K - 1) * hop + L                    # == (K + 1) * hop

    in_dtype = mixture_w.dtype
    est_mask = est_mask.astype(in_dtype)
    weight_nl = weight_nl.astype(in_dtype)   # match MXU operand dtypes
    out_dtype = jnp.dtype(out_dtype)

    # ---- frame-axis tiling against the VMEM budget --------------------------
    budget = _vmem_budget_bytes()
    tk = _pick_frame_tile(N, L, in_dtype.itemsize, out_dtype.itemsize,
                          budget, tk_max)
    if K <= tk:
        tk = K                               # single tile; block == full dim
    nt = pl.cdiv(K, tk)
    k_pad = nt * tk
    ragged = (k_pad != K)                    # masked in-kernel; no jnp.pad copy

    kernel = functools.partial(_decoder_kernel, k_valid=K, tk=tk, ragged=ragged)
    raw = pl.pallas_call(
        kernel,
        out_shape=jax.ShapeDtypeStruct((M, nt, L, tk), out_dtype),
        grid_spec=pltpu.PrefetchScalarGridSpec(
            num_scalar_prefetch=0,
            grid=(nt, M),                    # frame tiles first: megacore splits them
            in_specs=[
                pl.BlockSpec((1, N, tk), lambda t, b: (b, 0, t)),
                pl.BlockSpec((1, N, tk), lambda t, b: (b, 0, t)),
                pl.BlockSpec((N, L), lambda t, b: (0, 0)),
            ],
            out_specs=pl.BlockSpec((1, 1, L, tk), lambda t, b: (b, t, 0, 0)),
        ),
        compiler_params=pltpu.CompilerParams(
            dimension_semantics=("parallel", "parallel"),
            vmem_limit_bytes=budget,
        ),
    )(mixture_w, est_mask, weight_nl)

    # ---- wrapper epilogue: 50%-hop overlap-and-add + flatten to [M, T] ------
    # raw[m, t, l, c] = frame (t*tk + c), filter sample l.
    est = jnp.swapaxes(raw, 2, 3).reshape(M, k_pad, L)            # [M, k_pad, L]
    zero = jnp.zeros((M, 1, hop), est.dtype)
    segs = (jnp.concatenate([est[:, :, :hop], zero], axis=1)
            + jnp.concatenate([zero, est[:, :, hop:]], axis=1))   # [M, k_pad+1, hop]
    return segs.reshape(M, (k_pad + 1) * hop)[:, :T]


def _reference(mixture_w, est_mask, weight_nl):
    # Pure-JAX reference of the PyTorch forward (f32).
    M, N, K = mixture_w.shape
    L = weight_nl.shape[1]
    hop = L // 2
    est = jnp.einsum("mnk,nl->mkl",
                     (mixture_w * est_mask).astype(jnp.float32),
                     weight_nl.astype(jnp.float32))               # [M, K, L]
    T = (K - 1) * hop + L
    out = jnp.zeros((M, K + 1, hop), jnp.float32)
    out = out.at[:, :K, :].add(est[:, :, :hop])
    out = out.at[:, 1:, :].add(est[:, :, hop:])
    return out.reshape(M, T)


if __name__ == "__main__":
    # Small shapes consistent with the module: batch M=2, basis N=64,
    # filter length L=16 (hop=8), frames K=256. tk_max=128 forces the
    # K-tiled multi-tile path in the demo.
    M, N, K, L = 2, 64, 256, 16

    key = jax.random.PRNGKey(0)
    k1, k2, k3 = jax.random.split(key, 3)
    mixture_w = jax.random.normal(k1, (M, N, K), dtype=jnp.float32)
    est_mask = jax.random.uniform(k2, (M, N, K), dtype=jnp.float32)
    # nn.Linear(N, L, bias=False) stores weight as [L, N]; kernel consumes its
    # transpose [N, L] so that y = x @ W_pt.T == x @ weight_nl.
    w_pt = jax.random.normal(k3, (L, N), dtype=jnp.float32) * 0.1
    weight_nl = w_pt.T

    # f32 path, multi-tile.
    out = jax.block_until_ready(
        decoder_forward(mixture_w, est_mask, weight_nl, tk_max=128))
    ref = _reference(mixture_w, est_mask, weight_nl)
    assert out.shape == ref.shape
    assert jnp.allclose(out, ref, atol=1e-4, rtol=1e-4)

    # Ragged K (K % tk != 0): exercised via the in-kernel lane mask.
    K2 = 200
    m2 = jax.random.normal(k1, (M, N, K2), dtype=jnp.float32)
    e2 = jax.random.uniform(k2, (M, N, K2), dtype=jnp.float32)
    out2 = jax.block_until_ready(decoder_forward(m2, e2, weight_nl, tk_max=128))
    ref2 = _reference(m2, e2, weight_nl)
    assert out2.shape == ref2.shape
    assert jnp.allclose(out2, ref2, atol=1e-4, rtol=1e-4)

    # Small-K path (single tile, block == full frame axis).
    K3 = 96
    m3 = jax.random.normal(k1, (M, N, K3), dtype=jnp.float32)
    e3 = jax.random.uniform(k2, (M, N, K3), dtype=jnp.float32)
    out3 = jax.block_until_ready(decoder_forward(m3, e3, weight_nl, tk_max=128))
    ref3 = _reference(m3, e3, weight_nl)
    assert out3.shape == ref3.shape
    assert jnp.allclose(out3, ref3, atol=1e-4, rtol=1e-4)

    # bf16 HBM path (recommended production dtype for this HBM-bound op),
    # bf16 output writeback; f32 accumulation stays inside the MXU.
    m_bf = mixture_w.astype(jnp.bfloat16)
    e_bf = est_mask.astype(jnp.bfloat16)
    w_bf = weight_nl.astype(jnp.bfloat16)
    out_bf = jax.block_until_ready(
        decoder_forward(m_bf, e_bf, w_bf, tk_max=128, out_dtype=jnp.bfloat16))
    ref_bf = _reference(m_bf.astype(jnp.float32), e_bf.astype(jnp.float32),
                        w_bf.astype(jnp.float32))
    assert out_bf.shape == ref_bf.shape
    assert jnp.allclose(out_bf.astype(jnp.float32), ref_bf, atol=3e-2, rtol=3e-2)

    print("KERNEL_OK")
</pallas_src>

<mosaic_0001>
module attributes {stable_mosaic.version = 11 : i64} {
  func.func @_decoder_kernel(%arg0: i32, %arg1: i32, %arg2: memref<1x64x128xf32, #tpu.memory_space<vmem>>, %arg3: memref<1x64x128xf32, #tpu.memory_space<vmem>>, %arg4: memref<64x16xf32, #tpu.memory_space<vmem>>, %arg5: memref<1x1x16x128xf32, #tpu.memory_space<vmem>>) attributes {dimension_semantics = [#tpu.dimension_semantics<parallel>, #tpu.dimension_semantics<parallel>], iteration_bounds = array<i64: 2, 2>, scalar_prefetch = 0 : i64, scratch_operands = 0 : i64, tpu.core_type = #tpu.core_type<tc>, window_params = [{transform_indices = @transform_0, window_bounds = array<i64: 1, 64, 128>}, {transform_indices = @transform_1, window_bounds = array<i64: 1, 64, 128>}, {pipeline_mode = #tpu.pipeline_mode<synchronous>, transform_indices = @transform_2, window_bounds = array<i64: 64, 16>}, {transform_indices = @transform_3, window_bounds = array<i64: 1, 1, 16, 128>}]} {
    %c0 = arith.constant 0 : index
    %c0_0 = arith.constant 0 : index
    %c0_1 = arith.constant 0 : index
    %0 = vector.load %arg2[%c0, %c0_0, %c0_1] : memref<1x64x128xf32, #tpu.memory_space<vmem>>, vector<1x64x128xf32>
    %1 = vector.shape_cast %0 : vector<1x64x128xf32> to vector<64x128xf32>
    %c0_2 = arith.constant 0 : index
    %c0_3 = arith.constant 0 : index
    %c0_4 = arith.constant 0 : index
    %2 = vector.load %arg3[%c0_2, %c0_3, %c0_4] : memref<1x64x128xf32, #tpu.memory_space<vmem>>, vector<1x64x128xf32>
    %3 = vector.shape_cast %2 : vector<1x64x128xf32> to vector<64x128xf32>
    %4 = arith.mulf %1, %3 : vector<64x128xf32>
    %c0_5 = arith.constant 0 : index
    %c0_6 = arith.constant 0 : index
    %5 = vector.load %arg4[%c0_5, %c0_6] : memref<64x16xf32, #tpu.memory_space<vmem>>, vector<64x16xf32>
    %cst = arith.constant dense<0.000000e+00> : vector<16x128xf32>
    %6 = tpu.matmul %5, %4, %cst {dimension_numbers = #tpu.dot_dimension_numbers<[0], [0], [1], [1], [0, 1, 1, 1], [], []>} : vector<64x16xf32>, vector<64x128xf32>, vector<16x128xf32> -> vector<16x128xf32>
    %c0_7 = arith.constant 0 : index
    %c0_8 = arith.constant 0 : index
    %c0_9 = arith.constant 0 : index
    %c0_10 = arith.constant 0 : index
    %7 = vector.load %arg5[%c0_7, %c0_8, %c0_9, %c0_10] : memref<1x1x16x128xf32, #tpu.memory_space<vmem>>, vector<1x1x16x128xf32>
    %8 = vector.shape_cast %7 : vector<1x1x16x128xf32> to vector<16x128xf32>
    %9 = vector.shape_cast %6 : vector<16x128xf32> to vector<1x1x16x128xf32>
    tpu.vector_store %arg5[%c0_7, %c0_8, %c0_9, %c0_10], %9 {strides = array<i32>} : memref<1x1x16x128xf32, #tpu.memory_space<vmem>>, vector<1x1x16x128xf32>,
    return
  }
  func.func @transform_0(%arg0: i32, %arg1: i32) -> (i32, i32, i32) {
    %c0_i32 = arith.constant 0 : i32
    %c0_i32_0 = arith.constant 0 : i32
    return %arg1, %c0_i32, %arg0 : i32, i32, i32
  }
  func.func @transform_1(%arg0: i32, %arg1: i32) -> (i32, i32, i32) {
    %c0_i32 = arith.constant 0 : i32
    %c0_i32_0 = arith.constant 0 : i32
    return %arg1, %c0_i32, %arg0 : i32, i32, i32
  }
  func.func @transform_2(%arg0: i32, %arg1: i32) -> (i32, i32) {
    %c0_i32 = arith.constant 0 : i32
    %c0_i32_0 = arith.constant 0 : i32
    %c0_i32_1 = arith.constant 0 : i32
    return %c0_i32, %c0_i32_0 : i32, i32
  }
  func.func @transform_3(%arg0: i32, %arg1: i32) -> (i32, i32, i32, i32) {
    %c0_i32 = arith.constant 0 : i32
    %c0_i32_0 = arith.constant 0 : i32
    %c0_i32_1 = arith.constant 0 : i32
    return %arg1, %arg0, %c0_i32, %c0_i32_0 : i32, i32, i32, i32
  }
}

</mosaic_0001>

<llo_original>
// kernel: tpu_custom_call.1
$region0: #{tpu_custom_call.1}
  #allocation0 [shape = 'u32[]', space=smem, size = 0x4, offset = 0x4, fixed_abs, tag = 'smem constant byte address 0x4 - core index']
  #allocation1 [shape = 'u32[144,128]{1,0:T(1,128)}', space=vmem, size = 0x12000, scoped, tag = 'internal scratch']
  %s0 = inlined_call_operand.hbm [shape: f32[2,64,256], index: 0, kind: input, shape index: {}]
  %s1 = inlined_call_operand.hbm [shape: f32[2,64,256], index: 1, kind: input, shape index: {}]
  %s2 = inlined_call_operand.vmem [shape: f32[64,16], index: 2, kind: input, shape index: {}]
  %s3 = inlined_call_operand.hbm [shape: f32[2,2,16,128], index: 3, kind: output, shape index: {}]
  %s4 = sld [smem:[#allocation0]]
  $region53: #{tpu_custom_call.1} parent=0
    _
  %s6 = ssub.s32 1, %s4
  %s7 = scalar_select 0, %s6, %s4
  $region1: #{tpu_custom_call.1} parent=0
    #allocation2 [shape = 'u8[65536]{0}', space=vmem, size = 0x10000, scoped, tag = 'input window, operand 0']
    #allocation3 [shape = 's32[2]{0}', space=sflag, size = 0x8, scoped, tag = 'scoped memory for tpu_custom_call.1']
    #allocation4 [shape = 's32[2]{0}', space=sflag, size = 0x8, scoped, tag = 'scoped memory for tpu_custom_call.1']
    #allocation5 [shape = 'u8[65536]{0}', space=vmem, size = 0x10000, scoped, tag = 'input window, operand 1']
    #allocation6 [shape = 's32[2]{0}', space=sflag, size = 0x8, scoped, tag = 'scoped memory for tpu_custom_call.1']
    #allocation7 [shape = 'u8[16384]{0}', space=vmem, size = 0x4000, scoped, tag = 'output window, operand 0']
    %8 = vsyncpa [#allocation3], 0
    %s9 = scalar_lea.sflag [#allocation3], 1
    %10 = vsyncpa %s9, 0
    %11 = vsyncpa [#allocation6], 0
    %s12 = scalar_lea.sflag [#allocation6], 1
    %13 = vsyncpa %s12, 0
    %14 = vsyncpa [#allocation4], 0
    %s15 = scalar_lea.sflag [#allocation4], 1
    %16 = vsyncpa %s15, 0
    loop: start=0, step=1, limit=6
    $region2: #{tpu_custom_call.1} parent=1 // loop_pre_header
      _
    $region3: #{tpu_custom_call.1} parent=1 // loop_header
      %s18 = sphi 0, %s22
      %p19 = scmp.ge.s32.totalorder %s18, 6
      %s25 = sphi 0, %s37
      %s26 = sphi 0, %s33
      %s27 = sphi 0, %s25
      %s28 = sphi 0, %s26
      %s29 = sphi 0, %s27
      %s30 = sphi 0, %s28
      %s42 = sphi 0, %s44
      %s45 = sphi 0, %s42
      %s46 = sphi 0, %s45
      %s62 = sphi 0, %s46
      %s70 = sphi 0, %s72
      %s73 = sphi 0, %s70
      %s74 = sphi 0, %s73
      %s90 = sphi 0, %s74
      %s94 = sphi 0, %s94
      %s96 = sphi 0, %s94
      %s97 = sphi 0, %s96
      %s111 = sphi 0, %s97
      %s119 = sphi 0, %s121
      %s122 = sphi 0, %s119
      %s123 = sphi 0, %s122
      %s139 = sphi 0, %s123
    $region4: #{tpu_custom_call.1} parent=1 // loop_header_branch
      %21 = sbr.rel (%p19) target = $region8
    $region5: #{tpu_custom_call.1} parent=1 // loop_body
      %s23 = ssub.s32 %s18, 1
      %s24 = ssub.s32 %s18, 2
      %s31 = sadd.s32 1, %s26
      %p32 = scmp.ge.s32.totalorder %s31, 2
      %s33 = scalar_select %p32, 0, %s31
      %s34 = sadd.s32 1, %s25
      %s35 = scalar_select %p32, %s34, %s25
      %p36 = scmp.ge.s32.totalorder %s35, 2
      %s37 = scalar_select %p36, 0, %s35
      %s38 = ssub.s32 %s26, %s33
      %s39 = ssub.s32 %s25, %s37
      %s40 = sor.u32 %s38, %s39
      %p41 = scmp.eq.s32.totalorder %s40, 0
      %s43 = sadd.s32 %s42, 1
      %s44 = scalar_select %p41, %s42, %s43
      %p47 = pneg %p41
      %p48 = scmp.eq.s32.totalorder %s18, 3
      %p49 = por %p47, %p48
      %p50 = scmp.ne.s32.totalorder %s42, %s45
      %p51 = scmp.eq.s32.totalorder %s18, 0
      %p52 = por %p50, %p51
      %p53 = scmp.ne.s32.totalorder %s42, %s45
      %p54 = scmp.eq.s32.totalorder %s23, 3
      %p55 = por %p53, %p54
      %p56 = scmp.ne.s32.totalorder %s45, %s46
      %p57 = scmp.eq.s32.totalorder %s23, 0
      %p58 = por %p56, %p57
      %p59 = scmp.ne.s32.totalorder %s45, %s46
      %p60 = scmp.eq.s32.totalorder %s24, 3
      %p61 = por %p59, %p60
      %p63 = scmp.ne.s32.totalorder %s46, %s62
      %p64 = scmp.eq.s32.totalorder %s24, 0
      %p65 = por %p63, %p64
      %s66 = ssub.s32 %s26, %s33
      %s67 = ssub.s32 %s25, %s37
      %s68 = sor.u32 %s66, %s67
      %p69 = scmp.eq.s32.totalorder %s68, 0
      %s71 = sadd.s32 %s70, 1
      %s72 = scalar_select %p69, %s70, %s71
      %p75 = pneg %p69
      %p76 = scmp.eq.s32.totalorder %s18, 3
      %p77 = por %p75, %p76
      %p78 = scmp.ne.s32.totalorder %s70, %s73
      %p79 = scmp.eq.s32.totalorder %s18, 0
      %p80 = por %p78, %p79
      %p81 = scmp.ne.s32.totalorder %s70, %s73
      %p82 = scmp.eq.s32.totalorder %s23, 3
      %p83 = por %p81, %p82
      %p84 = scmp.ne.s32.totalorder %s73, %s74
      %p85 = scmp.eq.s32.totalorder %s23, 0
      %p86 = por %p84, %p85
      %p87 = scmp.ne.s32.totalorder %s73, %s74
      %p88 = scmp.eq.s32.totalorder %s24, 3
      %p89 = por %p87, %p88
      %p91 = scmp.ne.s32.totalorder %s74, %s90
      %p92 = scmp.eq.s32.totalorder %s24, 0
      %p93 = por %p91, %p92
      %s95 = sadd.s32 %s94, 1
      %p98 = scmp.eq.s32.totalorder %s18, 3
      %p99 = scmp.ne.s32.totalorder %s94, %s96
      %p100 = scmp.eq.s32.totalorder %s18, 0
      %p101 = por %p99, %p100
      %p102 = scmp.ne.s32.totalorder %s94, %s96
      %p103 = scmp.eq.s32.totalorder %s23, 3
      %p104 = por %p102, %p103
      %p105 = scmp.ne.s32.totalorder %s96, %s97
      %p106 = scmp.eq.s32.totalorder %s23, 0
      %p107 = por %p105, %p106
      %p108 = scmp.ne.s32.totalorder %s96, %s97
      %p109 = scmp.eq.s32.totalorder %s24, 3
      %p110 = por %p108, %p109
      %p112 = scmp.ne.s32.totalorder %s97, %s111
      %p113 = scmp.eq.s32.totalorder %s24, 0
      %p114 = por %p112, %p113
      %s115 = ssub.s32 %s26, %s33
      %s116 = ssub.s32 %s25, %s37
      %s117 = sor.u32 %s115, %s116
      %p118 = scmp.eq.s32.totalorder %s117, 0
      %s120 = sadd.s32 %s119, 1
      %s121 = scalar_select %p118, %s119, %s120
      %p124 = pneg %p118
      %p125 = scmp.eq.s32.totalorder %s18, 3
      %p126 = por %p124, %p125
      %p127 = scmp.ne.s32.totalorder %s119, %s122
      %p128 = scmp.eq.s32.totalorder %s18, 0
      %p129 = por %p127, %p128
      %p130 = scmp.ne.s32.totalorder %s119, %s122
      %p131 = scmp.eq.s32.totalorder %s23, 3
      %p132 = por %p130, %p131
      %p133 = scmp.ne.s32.totalorder %s122, %s123
      %p134 = scmp.eq.s32.totalorder %s23, 0
      %p135 = por %p133, %p134
      %p136 = scmp.ne.s32.totalorder %s122, %s123
      %p137 = scmp.eq.s32.totalorder %s24, 3
      %p138 = por %p136, %p137
      %p140 = scmp.ne.s32.totalorder %s123, %s139
      %p141 = scmp.eq.s32.totalorder %s24, 0
      %p142 = por %p140, %p141
      %p143 = scmp.le.s32.totalorder 1, %s18
      %p144 = scmp.lt.s32.totalorder %s18, 5
      %p145 = pnand %p143, %p144
      %p146 = pneg %p145
      // Predicated region
      $region9: #{tpu_custom_call.1} parent=5 // pred_check
        _
      $region10: #{tpu_custom_call.1} parent=5 // pred_check_branch
        %148 = sbr.rel (%p145) target = $region12
      $region11: #{tpu_custom_call.1} parent=5 // pred_region
        %s149 = ssub.s32 %s18, 1
        // Predicated region
        $region13: #{tpu_custom_call.1} parent=11 // pred_check
          %p150 = pneg %p107
        $region14: #{tpu_custom_call.1} parent=11 // pred_check_branch
          %152 = sbr.rel (%p150) target = $region16
        $region15: #{tpu_custom_call.1} parent=11 // pred_region
          _
        $region16: #{tpu_custom_call.1} parent=11 // pred_fallthru
          _
      $region12: #{tpu_custom_call.1} parent=5 // pred_fallthru
        _
      %p153 = scmp.lt.s32.totalorder %s18, 4
      // Predicated region
      $region17: #{tpu_custom_call.1} parent=5 // pred_check
        %p154 = pneg %p153
      $region18: #{tpu_custom_call.1} parent=5 // pred_check_branch
        %156 = sbr.rel (%p154) target = $region20
      $region19: #{tpu_custom_call.1} parent=5 // pred_region
        // Predicated region
        $region21: #{tpu_custom_call.1} parent=19 // pred_check
          %p157 = pneg %p52
        $region22: #{tpu_custom_call.1} parent=19 // pred_check_branch
          %159 = sbr.rel (%p157) target = $region24
        $region23: #{tpu_custom_call.1} parent=19 // pred_region
          %s160 = sand.u32 %s42, 1
          %s161 = scalar_lea.sflag [#allocation3], %s160
          %s162 = sand.u32 %s42, 1
          %s163 = smul.addr %s162, 64
          %s164 = scalar_lea.vmem [#allocation2], %s163
          %s166 = ssub.s32 1024, 1024
          %167 = vsyncadd %s161, %s166
          %s168 = smul.addr %s26, 16
          %s169 = sadd.s32 %s25, %s168
          %s170 = smul.addr %s169, 128
          %s171 = scalar_lea.hbm %s0, %s170
          %s172 = sshll.u32 %s164, 4
          %s173 = int_to_ptr.vmem [resolvable:$true] %s172
          %178 = dma.hbm_to_vmem [thread:$0]  %s171, 1024, %s173, %s161, 256, 128, 8
        $region24: #{tpu_custom_call.1} parent=19 // pred_fallthru
          _
        // Predicated region
        $region25: #{tpu_custom_call.1} parent=19 // pred_check
          %p179 = pneg %p80
        $region26: #{tpu_custom_call.1} parent=19 // pred_check_branch
          %181 = sbr.rel (%p179) target = $region28
        $region27: #{tpu_custom_call.1} parent=19 // pred_region
          %s182 = sand.u32 %s70, 1
          %s183 = scalar_lea.sflag [#allocation6], %s182
          %s184 = sand.u32 %s70, 1
          %s185 = smul.addr %s184, 64
          %s186 = scalar_lea.vmem [#allocation5], %s185
          %s188 = ssub.s32 1024, 1024
          %189 = vsyncadd %s183, %s188
          %s190 = smul.addr %s26, 16
          %s191 = sadd.s32 %s25, %s190
          %s192 = smul.addr %s191, 128
          %s193 = scalar_lea.hbm %s1, %s192
          %s194 = sshll.u32 %s186, 4
          %s195 = int_to_ptr.vmem [resolvable:$true] %s194
          %200 = dma.hbm_to_vmem [thread:$0]  %s193, 1024, %s195, %s183, 256, 128, 8
        $region28: #{tpu_custom_call.1} parent=19 // pred_fallthru
          _
      $region20: #{tpu_custom_call.1} parent=5 // pred_fallthru
        _
      %p201 = scmp.le.s32.totalorder 1, %s18
      %p202 = scmp.lt.s32.totalorder %s18, 5
      %p203 = pnand %p201, %p202
      %p204 = pneg %p203
      // Predicated region
      $region29: #{tpu_custom_call.1} parent=5 // pred_check
        _
      $region30: #{tpu_custom_call.1} parent=5 // pred_check_branch
        %206 = sbr.rel (%p203) target = $region32
      $region31: #{tpu_custom_call.1} parent=5 // pred_region
        %s207 = ssub.s32 %s18, 1
        %s208 = sand.u32 %s45, 1
        %s209 = scalar_lea.sflag [#allocation3], %s208
        %s210 = sand.u32 %s45, 1
        %s211 = smul.addr %s210, 64
        %s212 = scalar_lea.vmem [#allocation2], %s211
        // Predicated region
        $region33: #{tpu_custom_call.1} parent=31 // pred_check
          %p213 = pneg %p58
        $region34: #{tpu_custom_call.1} parent=31 // pred_check_branch
          %215 = sbr.rel (%p213) target = $region36
        $region35: #{tpu_custom_call.1} parent=31 // pred_region
          %216 = dma.done %s209, 1024
        $region36: #{tpu_custom_call.1} parent=31 // pred_fallthru
          _
        %s217 = sand.u32 %s73, 1
        %s218 = scalar_lea.sflag [#allocation6], %s217
        %s219 = sand.u32 %s73, 1
        %s220 = smul.addr %s219, 64
        %s221 = scalar_lea.vmem [#allocation5], %s220
        // Predicated region
        $region37: #{tpu_custom_call.1} parent=31 // pred_check
          %p222 = pneg %p86
        $region38: #{tpu_custom_call.1} parent=31 // pred_check_branch
          %224 = sbr.rel (%p222) target = $region40
        $region39: #{tpu_custom_call.1} parent=31 // pred_region
          %225 = dma.done %s218, 1024
        $region40: #{tpu_custom_call.1} parent=31 // pred_fallthru
          _
        %s226 = sand.u32 %s45, 1
        %s227 = scalar_lea.sflag [#allocation3], %s226
        %s228 = sand.u32 %s45, 1
        %s229 = smul.addr %s228, 64
        %s230 = scalar_lea.vmem [#allocation2], %s229
        %p231 = pneg %p58
        %p232 = pneg %p55
        %s233 = sand.u32 %s73, 1
        %s234 = scalar_lea.sflag [#allocation6], %s233
        %s235 = sand.u32 %s73, 1
        %s236 = smul.addr %s235, 64
        %s237 = scalar_lea.vmem [#allocation5], %s236
        %p238 = pneg %p86
        %p239 = pneg %p83
        %p240 = pneg %p107
        %p241 = pneg %p104
        %p242 = pneg %p135
        %p243 = pneg %p132
        %s244 = sand.u32 %s122, 1
        %s245 = scalar_lea.sflag [#allocation4], %s244
        %s246 = sand.u32 %s122, 1
        %s247 = smul.addr %s246, 16
        %s248 = scalar_lea.vmem [#allocation7], %s247
        %v249 = vld [vmem:[%s212] sm:$0xff]
        %v250 = vld [vmem:[%s212 + $0x8] sm:$0xff]
        %v251 = vld [vmem:[%s212 + $0x10] sm:$0xff]
        %v252 = vld [vmem:[%s212 + $0x18] sm:$0xff]
        %v253 = vld [vmem:[%s212 + $0x20] sm:$0xff]
        %v254 = vld [vmem:[%s212 + $0x28] sm:$0xff]
        %v255 = vld [vmem:[%s212 + $0x30] sm:$0xff]
        %v256 = vld [vmem:[%s212 + $0x38] sm:$0xff]
        %v257 = vld [vmem:[%s221] sm:$0xff]
        %v258 = vld [vmem:[%s221 + $0x8] sm:$0xff]
        %v259 = vld [vmem:[%s221 + $0x10] sm:$0xff]
        %v260 = vld [vmem:[%s221 + $0x18] sm:$0xff]
        %v261 = vld [vmem:[%s221 + $0x20] sm:$0xff]
        %v262 = vld [vmem:[%s221 + $0x28] sm:$0xff]
        %v263 = vld [vmem:[%s221 + $0x30] sm:$0xff]
        %v264 = vld [vmem:[%s221 + $0x38] sm:$0xff]
        %v265 = vmul.f32 %v249, %v257
        %v266 = vmul.f32 %v250, %v258
        %v267 = vmul.f32 %v251, %v259
        %v268 = vmul.f32 %v252, %v260
        %v269 = vmul.f32 %v253, %v261
        %v270 = vmul.f32 %v254, %v262
        %v271 = vmul.f32 %v255, %v263
        %v272 = vmul.f32 %v256, %v264
        %v273 = vld [vmem:[%s2] sm:$0xff]
        %v274 = vld [vmem:[%s2 + $0x8] sm:$0xff]
        %v275 = vld [vmem:[%s2 + $0x10] sm:$0xff]
        %v276 = vld [vmem:[%s2 + $0x18] sm:$0xff]
        %v277 = vld [vmem:[%s2 + $0x20] sm:$0xff]
        %v278 = vld [vmem:[%s2 + $0x28] sm:$0xff]
        %v279 = vld [vmem:[%s2 + $0x30] sm:$0xff]
        %v280 = vld [vmem:[%s2 + $0x38] sm:$0xff]
        %281 = vxpose.xlu0.b32.start [1/16] %v273, 128
        %282 = vxpose.xlu0.b32.cont [2/16] %v274, 128
        %283 = vxpose.xlu0.b32.cont [3/16] %v275, 128
        %284 = vxpose.xlu0.b32.cont [4/16] %v276, 128
        %285 = vxpose.xlu0.b32.cont [5/16] %v277, 128
        %286 = vxpose.xlu0.b32.cont [6/16] %v278, 128
        %287 = vxpose.xlu0.b32.cont [7/16] %v279, 128
        %288 = vxpose.xlu0.b32.cont [8/16] %v280, 128
        %289 = vxpose.xlu0.b32.cont [9/16] 0.0, 128
        %290 = vxpose.xlu0.b32.cont [10/16] 0.0, 128
        %291 = vxpose.xlu0.b32.cont [11/16] 0.0, 128
        %292 = vxpose.xlu0.b32.cont [12/16] 0.0, 128
        %293 = vxpose.xlu0.b32.cont [13/16] 0.0, 128
        %294 = vxpose.xlu0.b32.cont [14/16] 0.0, 128
        %295 = vxpose.xlu0.b32.cont [15/16] 0.0, 128
        %296 = vxpose.xlu0.b32.end [16/16] 0.0, 128
        %v297 = vpop.trf.xlu0
        %v298 = vpop.trf.xlu0
        %v299 = vpop.trf.xlu0
        %v300 = vpop.trf.xlu0
        %v301 = vpop.trf.xlu0
        %v302 = vpop.trf.xlu0
        %v303 = vpop.trf.xlu0
        %v304 = vpop.trf.xlu0
        %v305 = vpop.trf.xlu0
        %v306 = vpop.trf.xlu0
        %v307 = vpop.trf.xlu0
        %v308 = vpop.trf.xlu0
        %v309 = vpop.trf.xlu0
        %v310 = vpop.trf.xlu0
        %v311 = vpop.trf.xlu0
        %v312 = vpop.trf.xlu0
        %vm313 = vcmask 523264
        %v315 = vsel %vm313, %v297, 0
        %v318 = vsel %vm313, %v298, 0
        %320 = vmatprep.subr.mxu0 0.0
        %321 = vmatpush1.msra.mxu0 %v265
        %322 = vmatprep.subr.mxu0 0.0
        %323 = vmatpush1.msra.mxu0 %v266
        %324 = vmatprep.subr.mxu0 0.0
        %325 = vmatpush1.msra.mxu0 %v267
        %326 = vmatprep.subr.mxu0 0.0
        %327 = vmatpush1.msra.mxu0 %v268
        %328 = vmatprep.subr.mxu0 0.0
        %329 = vmatpush1.msra.mxu0 %v269
        %330 = vmatprep.subr.mxu0 0.0
        %331 = vmatpush1.msra.mxu0 %v270
        %332 = vmatprep.subr.mxu0 0.0
        %333 = vmatpush1.msra.mxu0 %v271
        %334 = vmatprep.subr.mxu0 0.0
        %335 = vmatpush1.msra.mxu0 %v272
        %336 = vmatprep.subr.mxu0 0.0
        %337 = vmatpush1.msra.mxu0 0.0
        %338 = vmatprep.subr.mxu0 0.0
        %339 = vmatpush1.msra.mxu0 0.0
        %340 = vmatprep.subr.mxu0 0.0
        %341 = vmatpush1.msra.mxu0 0.0
        %342 = vmatprep.subr.mxu0 0.0
        %343 = vmatpush1.msra.mxu0 0.0
        %344 = vmatprep.subr.mxu0 0.0
        %345 = vmatpush1.msra.mxu0 0.0
        %346 = vmatprep.subr.mxu0 0.0
        %347 = vmatpush1.msra.mxu0 0.0
        %348 = vmatprep.subr.mxu0 0.0
        %349 = vmatpush1.msra.mxu0 0.0
        %350 = vmatprep.subr.mxu0 0.0
        %351 = vmatpush1.msra.mxu0 0.0
        %352 = vmatprep.subr.mxu0 0.0
        %353 = vmatpush1.msra.mxu0 0.0
        %354 = vmatprep.subr.mxu0 0.0
        %355 = vmatpush1.msra.mxu0 0.0
        %356 = vmatprep.subr.mxu0 0.0
        %357 = vmatpush1.msra.mxu0 0.0
        %358 = vmatprep.subr.mxu0 0.0
        %359 = vmatpush1.msra.mxu0 0.0
        %360 = vmatprep.subr.mxu0 0.0
        %361 = vmatpush1.msra.mxu0 0.0
        %362 = vmatprep.subr.mxu0 0.0
        %363 = vmatpush1.msra.mxu0 0.0
        %364 = vmatprep.subr.mxu0 0.0
        %365 = vmatpush1.msra.mxu0 0.0
        %366 = vmatprep.subr.mxu0 0.0
        %367 = vmatpush1.msra.mxu0 0.0
        %368 = vmatprep.subr.mxu0 0.0
        %369 = vmatpush1.msra.mxu0 0.0
        %370 = vmatprep.subr.mxu0 0.0
        %371 = vmatpush1.msra.mxu0 0.0
        %372 = vmatprep.subr.mxu0 0.0
        %373 = vmatpush1.msra.mxu0 0.0
        %374 = vmatprep.subr.mxu0 0.0
        %375 = vmatpush1.msra.mxu0 0.0
        %376 = vmatprep.subr.mxu0 0.0
        %377 = vmatpush1.msra.mxu0 0.0
        %378 = vmatprep.subr.mxu0 0.0
        %379 = vmatpush1.msra.mxu0 0.0
        %380 = vmatprep.subr.mxu0 0.0
        %381 = vmatpush1.msra.mxu0 0.0
        %382 = vmatprep.subr.mxu0 0.0
        %383 = vmatpush1.msra.mxu0 0.0
        %384 = vmatprep.mubr.f32.mxu0 0.0
        %385 = vmatmul.mubr.f32.gmra.mrb[0].mxu0 %v315
        %v386 = vpop.f32.mrb[0].mxu0
        %v387 = vadd.f32 0.0, %v386
        %v388 = vpop.f32.mrb[0].mxu0
        %389 = vmatprep.mubr.f32.mxu0 0.0
        %390 = vmatmul.mubr.f32.gmra.mrb[0].mxu0 %v318
        %v391 = vpop.f32.mrb[0].mxu0
        %v392 = vadd.f32 0.0, %v391
        %v393 = vpop.f32.mrb[0].mxu0
        %394 = vdwg.mxu0
        %395 = vst [vmem:[%s248] sm:$0xff] %v387
        %396 = vst [vmem:[%s248 + $0x8] sm:$0xff] %v392
        %s397 = sand.u32 %s122, 1
        %s398 = scalar_lea.sflag [#allocation4], %s397
        %s399 = sand.u32 %s122, 1
        %s400 = smul.addr %s399, 16
        %s401 = scalar_lea.vmem [#allocation7], %s400
        // Predicated region
        $region41: #{tpu_custom_call.1} parent=31 // pred_check
          %p402 = pneg %p132
        $region42: #{tpu_custom_call.1} parent=31 // pred_check_branch
          %404 = sbr.rel (%p402) target = $region44
        $region43: #{tpu_custom_call.1} parent=31 // pred_region
          %s406 = ssub.s32 256, 256
          %407 = vsyncadd %s398, %s406
          %s408 = smul.addr %s27, 2
          %s409 = smul.addr %s28, 4
          %s410 = sadd.s32 %s408, %s409
          %s411 = smul.addr %s410, 128
          %s412 = scalar_lea.hbm %s3, %s411
          %s413 = sshll.u32 %s401, 4
          %s414 = int_to_ptr.vmem [resolvable:$true] %s413
          %419 = dma.vmem_to_hbm [thread:$0]  %s414, 256, %s412, %s398, 128, 128, 8
        $region44: #{tpu_custom_call.1} parent=31 // pred_fallthru
          _
      $region32: #{tpu_custom_call.1} parent=5 // pred_fallthru
        _
      %p420 = scmp.le.s32.totalorder 2, %s18
      // Predicated region
      $region45: #{tpu_custom_call.1} parent=5 // pred_check
        %p421 = pneg %p420
      $region46: #{tpu_custom_call.1} parent=5 // pred_check_branch
        %423 = sbr.rel (%p421) target = $region48
      $region47: #{tpu_custom_call.1} parent=5 // pred_region
        %s424 = ssub.s32 %s18, 2
        // Predicated region
        $region49: #{tpu_custom_call.1} parent=47 // pred_check
          %p425 = pneg %p138
        $region50: #{tpu_custom_call.1} parent=47 // pred_check_branch
          %427 = sbr.rel (%p425) target = $region52
        $region51: #{tpu_custom_call.1} parent=47 // pred_region
          %s428 = sand.u32 %s123, 1
          %s429 = scalar_lea.sflag [#allocation4], %s428
          %s430 = sand.u32 %s123, 1
          %s431 = smul.addr %s430, 16
          %s432 = scalar_lea.vmem [#allocation7], %s431
          %433 = dma.done %s429, 256
        $region52: #{tpu_custom_call.1} parent=47 // pred_fallthru
          _
      $region48: #{tpu_custom_call.1} parent=5 // pred_fallthru
        _
    $region6: #{tpu_custom_call.1} parent=1 // loop_footer
      %s22 = sadd.s32 1, %s18
    $region7: #{tpu_custom_call.1} parent=1 // loop_footer_branch
      %17 = sbr.rel target = $region3
    $region8: #{tpu_custom_call.1} parent=1 // loop_exit
      _
    %434 = vsyncpa [#allocation3], 1
    %s435 = scalar_lea.sflag [#allocation3], 1
    %436 = vsyncpa %s435, 1
    %437 = vsyncpa [#allocation6], 1
    %s438 = scalar_lea.sflag [#allocation6], 1
    %439 = vsyncpa %s438, 1
    %440 = vsyncpa [#allocation4], 1
    %s441 = scalar_lea.sflag [#allocation4], 1
    %442 = vsyncpa %s441, 1

</llo_original>
